<compile_context>
chip_gen: v5e
topology: v5e:2x2
jax: 0.10.0
libtpu: 0.0.40
codegen_flags: <defaults>
</compile_context>

<pallas_src>
import jax
import jax.numpy as jnp
from jax.experimental import pallas as pl
from jax.experimental.pallas import tpu as pltpu

NUM_CLASSES = 10
PADDED_CLASSES = 128   # lane-dense class slab; padded columns carry -inf bias
TILE_D = 512           # feature (K) tile: W tile = 512 x 128 bf16 = 128 KiB


def _round_up(x, m):
    return ((x + m - 1) // m) * m


def net_kernel(x_ref, w_ref, b_ref, o_ref, acc_ref):
    # x_ref: [tile_B, TILE_D] bf16      w_ref: [TILE_D, 128] bf16
    # b_ref: [1, 128] f32 (-inf pads)   o_ref: [tile_B, 128] f32
    # acc_ref: [tile_B, 128] f32 scratch (resident across the K axis)
    k = pl.program_id(1)

    @pl.when(k == 0)
    def _():
        acc_ref[...] = jnp.zeros_like(acc_ref)

    acc_ref[...] += jnp.dot(x_ref[...], w_ref[...],
                            preferred_element_type=jnp.float32)

    @pl.when(k == pl.num_programs(1) - 1)
    def _():
        logits = acc_ref[...] + b_ref[...]            # padded cols -> -inf
        m = jnp.max(logits, axis=1, keepdims=True)    # finite (real cols finite)
        e = jnp.exp(logits - m)                       # padded cols -> 0
        denom = jnp.sum(e, axis=1, keepdims=True)
        o_ref[...] = e * pl.reciprocal(denom, approx=True)


def prepare_head_params(w, b):
    """One-time (init-time) packing of the head params, outside the hot path.

    w: [D, NUM_CLASSES] f32, b: [NUM_CLASSES] f32
    Returns (w_pad [D_pad, 128] bf16, b_pad [1, 128] f32 with -inf pad columns).
    """
    D = w.shape[0]
    D_pad = _round_up(D, TILE_D)
    w_pad = jnp.zeros((D_pad, PADDED_CLASSES), jnp.bfloat16)
    w_pad = w_pad.at[:D, :NUM_CLASSES].set(w.astype(jnp.bfloat16))
    b_pad = jnp.full((1, PADDED_CLASSES), -jnp.inf, jnp.float32)
    b_pad = b_pad.at[0, :NUM_CLASSES].set(b.astype(jnp.float32))
    return w_pad, b_pad


def net_forward(X, c, w_pad, b_pad):
    """Equivalent of Net.forward(X, c): softmax(linear_head(flatten(X)), dim=1).

    X: [B, C, H, W] f32 (NCHW). c: unused (signature parity with the reference).
    w_pad/b_pad: outputs of prepare_head_params.
    """
    del c  # the reference forward ignores it
    B = X.shape[0]
    D = X.shape[1] * X.shape[2] * X.shape[3]
    D_pad = w_pad.shape[0]

    x2d = X.reshape(B, D).astype(jnp.bfloat16)

    tile_b = min(_round_up(B, 8), 128)
    B_pad = _round_up(B, tile_b)
    if (B_pad, D_pad) != (B, D):
        x2d = jnp.pad(x2d, ((0, B_pad - B), (0, D_pad - D)))

    grid = (B_pad // tile_b, D_pad // TILE_D)

    probs_padded = pl.pallas_call(
        net_kernel,
        out_shape=jax.ShapeDtypeStruct((B_pad, PADDED_CLASSES), jnp.float32),
        grid_spec=pltpu.PrefetchScalarGridSpec(
            num_scalar_prefetch=0,
            grid=grid,
            in_specs=[
                pl.BlockSpec((tile_b, TILE_D), lambda i, k: (i, k)),
                pl.BlockSpec((TILE_D, PADDED_CLASSES), lambda i, k: (k, 0)),
                pl.BlockSpec((1, PADDED_CLASSES), lambda i, k: (0, 0)),
            ],
            out_specs=pl.BlockSpec((tile_b, PADDED_CLASSES),
                                   lambda i, k: (i, 0)),
            scratch_shapes=[pltpu.VMEM((tile_b, PADDED_CLASSES), jnp.float32)],
        ),
        compiler_params=pltpu.CompilerParams(
            dimension_semantics=("parallel", "arbitrary"),
            vmem_limit_bytes=32 * 1024 * 1024,  # safe on v5e/v6e/v7x; tiles are tiny
        ),
    )(x2d, w_pad, b_pad)

    return probs_padded[:B, :NUM_CLASSES]


if __name__ == "__main__":
    key = jax.random.PRNGKey(0)
    kx, kc, kw, kb = jax.random.split(key, 4)

    B, C, H, W = 2, 4, 16, 16
    D = C * H * W

    X = jax.random.normal(kx, (B, C, H, W), dtype=jnp.float32)
    c = jax.random.normal(kc, (B, NUM_CLASSES), dtype=jnp.float32)  # unused, parity with forward(X, c)
    w = jax.random.normal(kw, (D, NUM_CLASSES), dtype=jnp.float32) * 0.02
    b = jax.random.normal(kb, (NUM_CLASSES,), dtype=jnp.float32) * 0.02

    # one-time parameter packing (init time, not the hot path)
    w_pad, b_pad = prepare_head_params(w, b)

    probs = net_forward(X, c, w_pad, b_pad)
    probs = jax.block_until_ready(probs)

    # sanity: softmax rows sum to ~1 (approx reciprocal -> loose tolerance)
    assert probs.shape == (B, NUM_CLASSES)
    assert bool(jnp.allclose(jnp.sum(probs, axis=1), 1.0, atol=1e-3))

    # reference in plain JAX with the same bf16 operand rounding, f32 accumulate
    x_bf = X.reshape(B, D).astype(jnp.bfloat16)
    w_bf = w.astype(jnp.bfloat16)
    logits_ref = jnp.dot(x_bf, w_bf, preferred_element_type=jnp.float32) + b
    ref = jax.nn.softmax(logits_ref, axis=1)
    assert bool(jnp.allclose(probs, ref, atol=2e-3))

    print("KERNEL_OK")
</pallas_src>

<mosaic_0001>
module attributes {stable_mosaic.version = 11 : i64} {
  func.func @net_kernel(%arg0: i32, %arg1: i32, %arg2: memref<8x512xbf16, #tpu.memory_space<vmem>>, %arg3: memref<512x128xbf16, #tpu.memory_space<vmem>>, %arg4: memref<1x128xf32, #tpu.memory_space<vmem>>, %arg5: memref<8x128xf32, #tpu.memory_space<vmem>>, %arg6: memref<8x128xf32, #tpu.memory_space<vmem>>) attributes {dimension_semantics = [#tpu.dimension_semantics<parallel>, #tpu.dimension_semantics<arbitrary>], iteration_bounds = array<i64: 1, 2>, scalar_prefetch = 0 : i64, scratch_operands = 1 : i64, tpu.core_type = #tpu.core_type<tc>, window_params = [{transform_indices = @transform_0, window_bounds = array<i64: 8, 512>}, {transform_indices = @transform_1, window_bounds = array<i64: 512, 128>}, {pipeline_mode = #tpu.pipeline_mode<synchronous>, transform_indices = @transform_2, window_bounds = array<i64: 1, 128>}, {transform_indices = @transform_3, window_bounds = array<i64: 8, 128>}]} {
    %c0_i32 = arith.constant 0 : i32
    %0 = arith.cmpi eq, %arg1, %c0_i32 : i32
    %1 = arith.extui %0 : i1 to i32
    %c0_i32_0 = arith.constant 0 : i32
    %2 = arith.cmpi ne, %1, %c0_i32_0 : i32
    scf.if %2 {
      %cst_9 = arith.constant 0.000000e+00 : f32
      %12 = vector.broadcast %cst_9 : f32 to vector<8x128xf32>
      %c0_10 = arith.constant 0 : index
      %c0_11 = arith.constant 0 : index
      %13 = vector.load %arg6[%c0_10, %c0_11] : memref<8x128xf32, #tpu.memory_space<vmem>>, vector<8x128xf32>
      tpu.vector_store %arg6[%c0_10, %c0_11], %12 {strides = array<i32>} : memref<8x128xf32, #tpu.memory_space<vmem>>, vector<8x128xf32>,
    } else {
    }
    %c0 = arith.constant 0 : index
    %c0_1 = arith.constant 0 : index
    %3 = vector.load %arg6[%c0, %c0_1] : memref<8x128xf32, #tpu.memory_space<vmem>>, vector<8x128xf32>
    %c0_2 = arith.constant 0 : index
    %c0_3 = arith.constant 0 : index
    %4 = vector.load %arg2[%c0_2, %c0_3] : memref<8x512xbf16, #tpu.memory_space<vmem>>, vector<8x512xbf16>
    %c0_4 = arith.constant 0 : index
    %c0_5 = arith.constant 0 : index
    %5 = vector.load %arg3[%c0_4, %c0_5] : memref<512x128xbf16, #tpu.memory_space<vmem>>, vector<512x128xbf16>
    %cst = arith.constant dense<0.000000e+00> : vector<8x128xf32>
    %6 = tpu.matmul %4, %5, %cst {dimension_numbers = #tpu.dot_dimension_numbers<[1], [0], [0], [1], [0, 0, 1, 1], [], []>} : vector<8x512xbf16>, vector<512x128xbf16>, vector<8x128xf32> -> vector<8x128xf32>
    %7 = arith.addf %3, %6 : vector<8x128xf32>
    %c0_6 = arith.constant 0 : index
    %c0_7 = arith.constant 0 : index
    %8 = vector.load %arg6[%c0_6, %c0_7] : memref<8x128xf32, #tpu.memory_space<vmem>>, vector<8x128xf32>
    tpu.vector_store %arg6[%c0_6, %c0_7], %7 {strides = array<i32>} : memref<8x128xf32, #tpu.memory_space<vmem>>, vector<8x128xf32>,
    %c1_i32 = arith.constant 1 : i32
    %9 = arith.cmpi eq, %arg1, %c1_i32 : i32
    %10 = arith.extui %9 : i1 to i32
    %c0_i32_8 = arith.constant 0 : i32
    %11 = arith.cmpi ne, %10, %c0_i32_8 : i32
    scf.if %11 {
      %c0_9 = arith.constant 0 : index
      %c0_10 = arith.constant 0 : index
      %12 = vector.load %arg6[%c0_9, %c0_10] : memref<8x128xf32, #tpu.memory_space<vmem>>, vector<8x128xf32>
      %c0_11 = arith.constant 0 : index
      %c0_12 = arith.constant 0 : index
      %13 = vector.load %arg4[%c0_11, %c0_12] : memref<1x128xf32, #tpu.memory_space<vmem>>, vector<1x128xf32>
      %14 = vector.broadcast %13 : vector<1x128xf32> to vector<8x128xf32>
      %15 = arith.addf %12, %14 : vector<8x128xf32>
      %cst_13 = arith.constant dense<0xFF800000> : vector<8xf32>
      %16 = vector.multi_reduction <maximumf>, %15, %cst_13 [1] : vector<8x128xf32> to vector<8xf32>
      %17 = vector.shape_cast %16 : vector<8xf32> to vector<8x1xf32>
      %18 = vector.broadcast %17 : vector<8x1xf32> to vector<8x128xf32>
      %19 = arith.subf %15, %18 : vector<8x128xf32>
      %20 = math.exp %19 : vector<8x128xf32>
      %cst_14 = arith.constant dense<0.000000e+00> : vector<8xf32>
      %21 = vector.multi_reduction <add>, %20, %cst_14 [1] : vector<8x128xf32> to vector<8xf32>
      %22 = vector.shape_cast %21 : vector<8xf32> to vector<8x1xf32>
      %23 = tpu.reciprocal %22 {approx = true} : vector<8x1xf32> -> vector<8x1xf32>
      %24 = vector.broadcast %23 : vector<8x1xf32> to vector<8x128xf32>
      %25 = arith.mulf %20, %24 : vector<8x128xf32>
      %c0_15 = arith.constant 0 : index
      %c0_16 = arith.constant 0 : index
      %26 = vector.load %arg5[%c0_15, %c0_16] : memref<8x128xf32, #tpu.memory_space<vmem>>, vector<8x128xf32>
      tpu.vector_store %arg5[%c0_15, %c0_16], %25 {strides = array<i32>} : memref<8x128xf32, #tpu.memory_space<vmem>>, vector<8x128xf32>,
    } else {
    }
    return
  }
  func.func @transform_0(%arg0: i32, %arg1: i32) -> (i32, i32) {
    %c0_i32 = arith.constant 0 : i32
    return %arg0, %arg1 : i32, i32
  }
  func.func @transform_1(%arg0: i32, %arg1: i32) -> (i32, i32) {
    %c0_i32 = arith.constant 0 : i32
    %c0_i32_0 = arith.constant 0 : i32
    return %arg1, %c0_i32 : i32, i32
  }
  func.func @transform_2(%arg0: i32, %arg1: i32) -> (i32, i32) {
    %c0_i32 = arith.constant 0 : i32
    %c0_i32_0 = arith.constant 0 : i32
    %c0_i32_1 = arith.constant 0 : i32
    return %c0_i32, %c0_i32_0 : i32, i32
  }
  func.func @transform_3(%arg0: i32, %arg1: i32) -> (i32, i32) {
    %c0_i32 = arith.constant 0 : i32
    %c0_i32_0 = arith.constant 0 : i32
    return %arg0, %c0_i32 : i32, i32
  }
}

</mosaic_0001>

<llo_original>
// kernel: tpu_custom_call.1
$region0: #{tpu_custom_call.1}
  #allocation0 [shape = 'u32[]', space=smem, size = 0x4, offset = 0x4, fixed_abs, tag = 'smem constant byte address 0x4 - core index']
  #allocation1 [shape = 'u32[72,128]{1,0:T(1,128)}', space=vmem, size = 0x9000, scoped, tag = 'internal scratch']
  #allocation2 [shape = 'f32[8,128]{1,0:T(8,128)}', space=vmem, size = 0x1000, scoped, tag = 'scratch operand']
  %s0 = inlined_call_operand.hbm [shape: bf16[8,1024], index: 0, kind: input, shape index: {}]
  %s1 = inlined_call_operand.hbm [shape: bf16[1024,128], index: 1, kind: input, shape index: {}]
  %s2 = inlined_call_operand.vmem [shape: f32[1,128], index: 2, kind: input, shape index: {}]
  %s3 = inlined_call_operand.hbm [shape: f32[8,128], index: 3, kind: output, shape index: {}]
  %s4 = sld [smem:[#allocation0]]
  $region61: #{tpu_custom_call.1} parent=0
    _
  %s6 = ssub.s32 1, %s4
  %s7 = scalar_select 0, %s6, %s4
  $region1: #{tpu_custom_call.1} parent=0
    #allocation3 [shape = 'u8[16384]{0}', space=vmem, size = 0x4000, scoped, tag = 'input window, operand 0']
    #allocation4 [shape = 's32[2]{0}', space=sflag, size = 0x8, scoped, tag = 'scoped memory for tpu_custom_call.1']
    #allocation5 [shape = 's32[2]{0}', space=sflag, size = 0x8, scoped, tag = 'scoped memory for tpu_custom_call.1']
    #allocation6 [shape = 'u8[262144]{0}', space=vmem, size = 0x40000, scoped, tag = 'input window, operand 1']
    #allocation7 [shape = 's32[2]{0}', space=sflag, size = 0x8, scoped, tag = 'scoped memory for tpu_custom_call.1']
    #allocation8 [shape = 'u8[4096]{0}', space=vmem, size = 0x1000, scoped, tag = 'output window, operand 0, single buffered']
    %8 = vsyncpa [#allocation4], 0
    %s9 = scalar_lea.sflag [#allocation4], 1
    %10 = vsyncpa %s9, 0
    %11 = vsyncpa [#allocation7], 0
    %s12 = scalar_lea.sflag [#allocation7], 1
    %13 = vsyncpa %s12, 0
    %14 = vsyncpa [#allocation5], 0
    loop: start=0, step=1, limit=4
    $region2: #{tpu_custom_call.1} parent=1 // loop_pre_header
      _
    $region3: #{tpu_custom_call.1} parent=1 // loop_header
      %s16 = sphi 0, %s20
      %p17 = scmp.ge.s32.totalorder %s16, 4
      %s23 = sphi 0, %s35
      %s24 = sphi 0, %s31
      %s25 = sphi 0, %s23
      %s26 = sphi 0, %s24
      %s27 = sphi 0, %s25
      %s28 = sphi 0, %s26
      %s40 = sphi 0, %s42
      %s43 = sphi 0, %s40
      %s44 = sphi 0, %s43
      %s60 = sphi 0, %s44
      %s66 = sphi 0, %s68
      %s69 = sphi 0, %s66
      %s70 = sphi 0, %s69
      %s86 = sphi 0, %s70
      %s90 = sphi 0, %s90
      %s92 = sphi 0, %s90
      %s93 = sphi 0, %s92
      %s107 = sphi 0, %s93
      %s113 = sphi 0, %s115
      %s116 = sphi 0, %s113
      %s117 = sphi 0, %s116
      %s133 = sphi 0, %s117
    $region4: #{tpu_custom_call.1} parent=1 // loop_header_branch
      %19 = sbr.rel (%p17) target = $region8
    $region5: #{tpu_custom_call.1} parent=1 // loop_body
      %s21 = ssub.s32 %s16, 1
      %s22 = ssub.s32 %s16, 2
      %s29 = sadd.s32 1, %s24
      %p30 = scmp.ge.s32.totalorder %s29, 2
      %s31 = scalar_select %p30, 0, %s29
      %s32 = sadd.s32 1, %s23
      %s33 = scalar_select %p30, %s32, %s23
      %p34 = scmp.ge.s32.totalorder %s33, 1
      %s35 = scalar_select %p34, 0, %s33
      %s36 = ssub.s32 %s23, %s35
      %s37 = ssub.s32 %s24, %s31
      %s38 = sor.u32 %s36, %s37
      %p39 = scmp.eq.s32.totalorder %s38, 0
      %s41 = sadd.s32 %s40, 1
      %s42 = scalar_select %p39, %s40, %s41
      %p45 = pneg %p39
      %p46 = scmp.eq.s32.totalorder %s16, 1
      %p47 = por %p45, %p46
      %p48 = scmp.ne.s32.totalorder %s40, %s43
      %p49 = scmp.eq.s32.totalorder %s16, 0
      %p50 = por %p48, %p49
      %p51 = scmp.ne.s32.totalorder %s40, %s43
      %p52 = scmp.eq.s32.totalorder %s21, 1
      %p53 = por %p51, %p52
      %p54 = scmp.ne.s32.totalorder %s43, %s44
      %p55 = scmp.eq.s32.totalorder %s21, 0
      %p56 = por %p54, %p55
      %p57 = scmp.ne.s32.totalorder %s43, %s44
      %p58 = scmp.eq.s32.totalorder %s22, 1
      %p59 = por %p57, %p58
      %p61 = scmp.ne.s32.totalorder %s44, %s60
      %p62 = scmp.eq.s32.totalorder %s22, 0
      %p63 = por %p61, %p62
      %s64 = ssub.s32 %s24, %s31
      %p65 = scmp.eq.s32.totalorder %s64, 0
      %s67 = sadd.s32 %s66, 1
      %s68 = scalar_select %p65, %s66, %s67
      %p71 = pneg %p65
      %p72 = scmp.eq.s32.totalorder %s16, 1
      %p73 = por %p71, %p72
      %p74 = scmp.ne.s32.totalorder %s66, %s69
      %p75 = scmp.eq.s32.totalorder %s16, 0
      %p76 = por %p74, %p75
      %p77 = scmp.ne.s32.totalorder %s66, %s69
      %p78 = scmp.eq.s32.totalorder %s21, 1
      %p79 = por %p77, %p78
      %p80 = scmp.ne.s32.totalorder %s69, %s70
      %p81 = scmp.eq.s32.totalorder %s21, 0
      %p82 = por %p80, %p81
      %p83 = scmp.ne.s32.totalorder %s69, %s70
      %p84 = scmp.eq.s32.totalorder %s22, 1
      %p85 = por %p83, %p84
      %p87 = scmp.ne.s32.totalorder %s70, %s86
      %p88 = scmp.eq.s32.totalorder %s22, 0
      %p89 = por %p87, %p88
      %s91 = sadd.s32 %s90, 1
      %p94 = scmp.eq.s32.totalorder %s16, 1
      %p95 = scmp.ne.s32.totalorder %s90, %s92
      %p96 = scmp.eq.s32.totalorder %s16, 0
      %p97 = por %p95, %p96
      %p98 = scmp.ne.s32.totalorder %s90, %s92
      %p99 = scmp.eq.s32.totalorder %s21, 1
      %p100 = por %p98, %p99
      %p101 = scmp.ne.s32.totalorder %s92, %s93
      %p102 = scmp.eq.s32.totalorder %s21, 0
      %p103 = por %p101, %p102
      %p104 = scmp.ne.s32.totalorder %s92, %s93
      %p105 = scmp.eq.s32.totalorder %s22, 1
      %p106 = por %p104, %p105
      %p108 = scmp.ne.s32.totalorder %s93, %s107
      %p109 = scmp.eq.s32.totalorder %s22, 0
      %p110 = por %p108, %p109
      %s111 = ssub.s32 %s23, %s35
      %p112 = scmp.eq.s32.totalorder %s111, 0
      %s114 = sadd.s32 %s113, 1
      %s115 = scalar_select %p112, %s113, %s114
      %p118 = pneg %p112
      %p119 = scmp.eq.s32.totalorder %s16, 1
      %p120 = por %p118, %p119
      %p121 = scmp.ne.s32.totalorder %s113, %s116
      %p122 = scmp.eq.s32.totalorder %s16, 0
      %p123 = por %p121, %p122
      %p124 = scmp.ne.s32.totalorder %s113, %s116
      %p125 = scmp.eq.s32.totalorder %s21, 1
      %p126 = por %p124, %p125
      %p127 = scmp.ne.s32.totalorder %s116, %s117
      %p128 = scmp.eq.s32.totalorder %s21, 0
      %p129 = por %p127, %p128
      %p130 = scmp.ne.s32.totalorder %s116, %s117
      %p131 = scmp.eq.s32.totalorder %s22, 1
      %p132 = por %p130, %p131
      %p134 = scmp.ne.s32.totalorder %s117, %s133
      %p135 = scmp.eq.s32.totalorder %s22, 0
      %p136 = por %p134, %p135
      %p137 = scmp.le.s32.totalorder 1, %s16
      %p138 = scmp.lt.s32.totalorder %s16, 3
      %p139 = pnand %p137, %p138
      %p140 = pneg %p139
      // Predicated region
      $region9: #{tpu_custom_call.1} parent=5 // pred_check
        _
      $region10: #{tpu_custom_call.1} parent=5 // pred_check_branch
        %142 = sbr.rel (%p139) target = $region12
      $region11: #{tpu_custom_call.1} parent=5 // pred_region
        %s143 = ssub.s32 %s16, 1
        // Predicated region
        $region13: #{tpu_custom_call.1} parent=11 // pred_check
          %p144 = pneg %p103
        $region14: #{tpu_custom_call.1} parent=11 // pred_check_branch
          %146 = sbr.rel (%p144) target = $region16
        $region15: #{tpu_custom_call.1} parent=11 // pred_region
          _
        $region16: #{tpu_custom_call.1} parent=11 // pred_fallthru
          _
      $region12: #{tpu_custom_call.1} parent=5 // pred_fallthru
        _
      %p147 = scmp.lt.s32.totalorder %s16, 2
      // Predicated region
      $region17: #{tpu_custom_call.1} parent=5 // pred_check
        %p148 = pneg %p147
      $region18: #{tpu_custom_call.1} parent=5 // pred_check_branch
        %150 = sbr.rel (%p148) target = $region20
      $region19: #{tpu_custom_call.1} parent=5 // pred_region
        // Predicated region
        $region21: #{tpu_custom_call.1} parent=19 // pred_check
          %p151 = pneg %p50
        $region22: #{tpu_custom_call.1} parent=19 // pred_check_branch
          %153 = sbr.rel (%p151) target = $region24
        $region23: #{tpu_custom_call.1} parent=19 // pred_region
          %s154 = sand.u32 %s40, 1
          %s155 = scalar_lea.sflag [#allocation4], %s154
          %s156 = sand.u32 %s40, 1
          %s157 = smul.addr %s156, 16
          %s158 = scalar_lea.vmem [#allocation3], %s157
          %s159 = smul.u32 4, %s24
          %161 = vsyncadd %s155, 0
          %s162 = smul.addr %s23, 8
          %s163 = sadd.s32 %s159, %s162
          %s164 = smul.addr %s163, 4
          %s165 = scalar_lea.hbm %s0, %s164
          %s167 = sshll.u32 %s165, 4
          %s168 = int_to_ptr.hbm [resolvable:$true] %s167
          %s169 = sshll.u32 %s158, 4
          %s170 = int_to_ptr.vmem [resolvable:$true] %s169
          %172 = dma.hbm_to_vmem [thread:$0]  %s168, 256, %s170, %s155
        $region24: #{tpu_custom_call.1} parent=19 // pred_fallthru
          _
        // Predicated region
        $region25: #{tpu_custom_call.1} parent=19 // pred_check
          %p173 = pneg %p76
        $region26: #{tpu_custom_call.1} parent=19 // pred_check_branch
          %175 = sbr.rel (%p173) target = $region28
        $region27: #{tpu_custom_call.1} parent=19 // pred_region
          %s176 = sand.u32 %s66, 1
          %s177 = scalar_lea.sflag [#allocation7], %s176
          %s178 = sand.u32 %s66, 1
          %s179 = smul.addr %s178, 256
          %s180 = scalar_lea.vmem [#allocation6], %s179
          %s181 = smul.u32 64, %s24
          %183 = vsyncadd %s177, 0
          %s184 = smul.addr %s181, 4
          %s185 = scalar_lea.hbm %s1, %s184
          %s186 = sshll.u32 %s185, 4
          %s187 = int_to_ptr.hbm [resolvable:$true] %s186
          %s188 = sshll.u32 %s180, 4
          %s189 = int_to_ptr.vmem [resolvable:$true] %s188
          %194 = dma.hbm_to_vmem [thread:$0]  %s187, 4096, %s189, %s177, 64, 64, 4
        $region28: #{tpu_custom_call.1} parent=19 // pred_fallthru
          _
      $region20: #{tpu_custom_call.1} parent=5 // pred_fallthru
        _
      %p195 = scmp.le.s32.totalorder 1, %s16
      %p196 = scmp.lt.s32.totalorder %s16, 3
      %p197 = pnand %p195, %p196
      %p198 = pneg %p197
      // Predicated region
      $region29: #{tpu_custom_call.1} parent=5 // pred_check
        _
      $region30: #{tpu_custom_call.1} parent=5 // pred_check_branch
        %200 = sbr.rel (%p197) target = $region32
      $region31: #{tpu_custom_call.1} parent=5 // pred_region
        %s201 = ssub.s32 %s16, 1
        %s202 = sand.u32 %s43, 1
        %s203 = scalar_lea.sflag [#allocation4], %s202
        %s204 = sand.u32 %s43, 1
        %s205 = smul.addr %s204, 16
        %s206 = scalar_lea.vmem [#allocation3], %s205
        // Predicated region
        $region33: #{tpu_custom_call.1} parent=31 // pred_check
          %p207 = pneg %p56
        $region34: #{tpu_custom_call.1} parent=31 // pred_check_branch
          %209 = sbr.rel (%p207) target = $region36
        $region35: #{tpu_custom_call.1} parent=31 // pred_region
          %211 = dma.done %s203, 256
        $region36: #{tpu_custom_call.1} parent=31 // pred_fallthru
          _
        %s212 = sand.u32 %s69, 1
        %s213 = scalar_lea.sflag [#allocation7], %s212
        %s214 = sand.u32 %s69, 1
        %s215 = smul.addr %s214, 256
        %s216 = scalar_lea.vmem [#allocation6], %s215
        // Predicated region
        $region37: #{tpu_custom_call.1} parent=31 // pred_check
          %p217 = pneg %p82
        $region38: #{tpu_custom_call.1} parent=31 // pred_check_branch
          %219 = sbr.rel (%p217) target = $region40
        $region39: #{tpu_custom_call.1} parent=31 // pred_region
          %221 = dma.done %s213, 4096
        $region40: #{tpu_custom_call.1} parent=31 // pred_fallthru
          _
        %s222 = sand.u32 %s43, 1
        %s223 = scalar_lea.sflag [#allocation4], %s222
        %s224 = sand.u32 %s43, 1
        %s225 = smul.addr %s224, 16
        %s226 = scalar_lea.vmem [#allocation3], %s225
        %p227 = pneg %p56
        %p228 = pneg %p53
        %s229 = sand.u32 %s69, 1
        %s230 = scalar_lea.sflag [#allocation7], %s229
        %s231 = sand.u32 %s69, 1
        %s232 = smul.addr %s231, 256
        %s233 = scalar_lea.vmem [#allocation6], %s232
        %p234 = pneg %p82
        %p235 = pneg %p79
        %p236 = pneg %p103
        %p237 = pneg %p100
        %p238 = pneg %p129
        %p239 = pneg %p126
        %s240 = smul.u32 4, %s26
        %s241 = smul.u32 64, %s26
        %p242 = scmp.eq.s32.totalorder %s26, 0
        // Predicated region
        $region41: #{tpu_custom_call.1} parent=31 // pred_check
          %p243 = pneg %p242
        $region42: #{tpu_custom_call.1} parent=31 // pred_check_branch
          %245 = sbr.rel (%p243) target = $region44
        $region43: #{tpu_custom_call.1} parent=31 // pred_region
          %246 = vst [vmem:[#allocation2] sm:$0xff] 0.0
        $region44: #{tpu_custom_call.1} parent=31 // pred_fallthru
          _
        %v247 = vld [vmem:[#allocation2] sm:$0xff]
        %v248 = vld [vmem:[%s206] sm:$0xff]
        %v249 = vld [vmem:[%s206 + $0x8] sm:$0xff]
        %v250 = vld [vmem:[%s216] sm:$0xf]
        %v251 = vld [vmem:[%s216 + $0x4] sm:$0xf]
        %v252 = vld [vmem:[%s216 + $0x8] sm:$0xf]
        %v253 = vld [vmem:[%s216 + $0xc] sm:$0xf]
        %v254 = vld [vmem:[%s216 + $0x10] sm:$0xf]
        %v255 = vld [vmem:[%s216 + $0x14] sm:$0xf]
        %v256 = vld [vmem:[%s216 + $0x18] sm:$0xf]
        %v257 = vld [vmem:[%s216 + $0x1c] sm:$0xf]
        %v258 = vld [vmem:[%s216 + $0x20] sm:$0xf]
        %v259 = vld [vmem:[%s216 + $0x24] sm:$0xf]
        %v260 = vld [vmem:[%s216 + $0x28] sm:$0xf]
        %v261 = vld [vmem:[%s216 + $0x2c] sm:$0xf]
        %v262 = vld [vmem:[%s216 + $0x30] sm:$0xf]
        %v263 = vld [vmem:[%s216 + $0x34] sm:$0xf]
        %v264 = vld [vmem:[%s216 + $0x38] sm:$0xf]
        %v265 = vld [vmem:[%s216 + $0x3c] sm:$0xf]
        %v266 = vld [vmem:[%s216 + $0x40] sm:$0xf]
        %v267 = vld [vmem:[%s216 + $0x44] sm:$0xf]
        %v268 = vld [vmem:[%s216 + $0x48] sm:$0xf]
        %v269 = vld [vmem:[%s216 + $0x4c] sm:$0xf]
        %v270 = vld [vmem:[%s216 + $0x50] sm:$0xf]
        %v271 = vld [vmem:[%s216 + $0x54] sm:$0xf]
        %v272 = vld [vmem:[%s216 + $0x58] sm:$0xf]
        %v273 = vld [vmem:[%s216 + $0x5c] sm:$0xf]
        %v274 = vld [vmem:[%s216 + $0x60] sm:$0xf]
        %v275 = vld [vmem:[%s216 + $0x64] sm:$0xf]
        %v276 = vld [vmem:[%s216 + $0x68] sm:$0xf]
        %v277 = vld [vmem:[%s216 + $0x6c] sm:$0xf]
        %v278 = vld [vmem:[%s216 + $0x70] sm:$0xf]
        %v279 = vld [vmem:[%s216 + $0x74] sm:$0xf]
        %v280 = vld [vmem:[%s216 + $0x78] sm:$0xf]
        %v281 = vld [vmem:[%s216 + $0x7c] sm:$0xf]
        %v282 = vld [vmem:[%s216 + $0x80] sm:$0xf]
        %v283 = vld [vmem:[%s216 + $0x84] sm:$0xf]
        %v284 = vld [vmem:[%s216 + $0x88] sm:$0xf]
        %v285 = vld [vmem:[%s216 + $0x8c] sm:$0xf]
        %v286 = vld [vmem:[%s216 + $0x90] sm:$0xf]
        %v287 = vld [vmem:[%s216 + $0x94] sm:$0xf]
        %v288 = vld [vmem:[%s216 + $0x98] sm:$0xf]
        %v289 = vld [vmem:[%s216 + $0x9c] sm:$0xf]
        %v290 = vld [vmem:[%s216 + $0xa0] sm:$0xf]
        %v291 = vld [vmem:[%s216 + $0xa4] sm:$0xf]
        %v292 = vld [vmem:[%s216 + $0xa8] sm:$0xf]
        %v293 = vld [vmem:[%s216 + $0xac] sm:$0xf]
        %v294 = vld [vmem:[%s216 + $0xb0] sm:$0xf]
        %v295 = vld [vmem:[%s216 + $0xb4] sm:$0xf]
        %v296 = vld [vmem:[%s216 + $0xb8] sm:$0xf]
        %v297 = vld [vmem:[%s216 + $0xbc] sm:$0xf]
        %v298 = vld [vmem:[%s216 + $0xc0] sm:$0xf]
        %v299 = vld [vmem:[%s216 + $0xc4] sm:$0xf]
        %v300 = vld [vmem:[%s216 + $0xc8] sm:$0xf]
        %v301 = vld [vmem:[%s216 + $0xcc] sm:$0xf]
        %v302 = vld [vmem:[%s216 + $0xd0] sm:$0xf]
        %v303 = vld [vmem:[%s216 + $0xd4] sm:$0xf]
        %v304 = vld [vmem:[%s216 + $0xd8] sm:$0xf]
        %v305 = vld [vmem:[%s216 + $0xdc] sm:$0xf]
        %v306 = vld [vmem:[%s216 + $0xe0] sm:$0xf]
        %v307 = vld [vmem:[%s216 + $0xe4] sm:$0xf]
        %v308 = vld [vmem:[%s216 + $0xe8] sm:$0xf]
        %v309 = vld [vmem:[%s216 + $0xec] sm:$0xf]
        %v310 = vld [vmem:[%s216 + $0xf0] sm:$0xf]
        %v311 = vld [vmem:[%s216 + $0xf4] sm:$0xf]
        %v312 = vld [vmem:[%s216 + $0xf8] sm:$0xf]
        %v313 = vld [vmem:[%s216 + $0xfc] sm:$0xf]
        %v316 = vunpack.c.l.b16 %v248
        %v317 = vunpack.c.h.b16 %v248
        %v318 = vunpack.c.l.b16 %v249
        %v319 = vunpack.c.h.b16 %v249
        %v320 = vpack.c.b16 %v316, %v316
        %v321 = vpack.c.b16 %v317, %v317
        %v322 = vpack.c.b16 %v318, %v318
        %v323 = vpack.c.b16 %v319, %v319
        %v392 = vunpack.c.l.b16 %v250
        %v393 = vunpack.c.l.b16 %v251
        %v394 = vunpack.c.l.b16 %v252
        %v395 = vunpack.c.l.b16 %v253
        %v396 = vunpack.c.l.b16 %v254
        %v397 = vunpack.c.l.b16 %v255
        %v398 = vunpack.c.l.b16 %v256
        %v399 = vunpack.c.l.b16 %v257
        %v400 = vunpack.c.l.b16 %v258
        %v401 = vunpack.c.l.b16 %v259
        %v402 = vunpack.c.l.b16 %v260
        %v403 = vunpack.c.l.b16 %v261
        %v404 = vunpack.c.l.b16 %v262
        %v405 = vunpack.c.l.b16 %v263
        %v406 = vunpack.c.l.b16 %v264
        %v407 = vunpack.c.l.b16 %v265
        %v408 = vunpack.c.l.b16 %v266
        %v409 = vunpack.c.l.b16 %v267
        %v410 = vunpack.c.l.b16 %v268
        %v411 = vunpack.c.l.b16 %v269
        %v412 = vunpack.c.l.b16 %v270
        %v413 = vunpack.c.l.b16 %v271
        %v414 = vunpack.c.l.b16 %v272
        %v415 = vunpack.c.l.b16 %v273
        %v416 = vunpack.c.l.b16 %v274
        %v417 = vunpack.c.l.b16 %v275
        %v418 = vunpack.c.l.b16 %v276
        %v419 = vunpack.c.l.b16 %v277
        %v420 = vunpack.c.l.b16 %v278
        %v421 = vunpack.c.l.b16 %v279
        %v422 = vunpack.c.l.b16 %v280
        %v423 = vunpack.c.l.b16 %v281
        %v424 = vunpack.c.l.b16 %v282
        %v425 = vunpack.c.l.b16 %v283
        %v426 = vunpack.c.l.b16 %v284
        %v427 = vunpack.c.l.b16 %v285
        %v428 = vunpack.c.l.b16 %v286
        %v429 = vunpack.c.l.b16 %v287
        %v430 = vunpack.c.l.b16 %v288
        %v431 = vunpack.c.l.b16 %v289
        %v432 = vunpack.c.l.b16 %v290
        %v433 = vunpack.c.l.b16 %v291
        %v434 = vunpack.c.l.b16 %v292
        %v435 = vunpack.c.l.b16 %v293
        %v436 = vunpack.c.l.b16 %v294
        %v437 = vunpack.c.l.b16 %v295
        %v438 = vunpack.c.l.b16 %v296
        %v439 = vunpack.c.l.b16 %v297
        %v440 = vunpack.c.l.b16 %v298
        %v441 = vunpack.c.l.b16 %v299
        %v442 = vunpack.c.l.b16 %v300
        %v443 = vunpack.c.l.b16 %v301
        %v444 = vunpack.c.l.b16 %v302
        %v445 = vunpack.c.l.b16 %v303
        %v446 = vunpack.c.l.b16 %v304
        %v447 = vunpack.c.l.b16 %v305
        %v448 = vunpack.c.l.b16 %v306
        %v449 = vunpack.c.l.b16 %v307
        %v450 = vunpack.c.l.b16 %v308
        %v451 = vunpack.c.l.b16 %v309
        %v452 = vunpack.c.l.b16 %v310
        %v453 = vunpack.c.l.b16 %v311
        %v454 = vunpack.c.l.b16 %v312
        %v455 = vunpack.c.l.b16 %v313
        %v456 = vpack.c.b16 %v393, %v392
        %v457 = vpack.c.b16 %v395, %v394
        %v458 = vpack.c.b16 %v397, %v396
        %v459 = vpack.c.b16 %v399, %v398
        %v460 = vpack.c.b16 %v401, %v400
        %v461 = vpack.c.b16 %v403, %v402
        %v462 = vpack.c.b16 %v405, %v404
        %v463 = vpack.c.b16 %v407, %v406
        %v464 = vpack.c.b16 %v409, %v408
        %v465 = vpack.c.b16 %v411, %v410
        %v466 = vpack.c.b16 %v413, %v412
        %v467 = vpack.c.b16 %v415, %v414
        %v468 = vpack.c.b16 %v417, %v416
        %v469 = vpack.c.b16 %v419, %v418
        %v470 = vpack.c.b16 %v421, %v420
        %v471 = vpack.c.b16 %v423, %v422
        %v472 = vpack.c.b16 %v425, %v424
        %v473 = vpack.c.b16 %v427, %v426
        %v474 = vpack.c.b16 %v429, %v428
        %v475 = vpack.c.b16 %v431, %v430
        %v476 = vpack.c.b16 %v433, %v432
        %v477 = vpack.c.b16 %v435, %v434
        %v478 = vpack.c.b16 %v437, %v436
        %v479 = vpack.c.b16 %v439, %v438
        %v480 = vpack.c.b16 %v441, %v440
        %v481 = vpack.c.b16 %v443, %v442
        %v482 = vpack.c.b16 %v445, %v444
        %v483 = vpack.c.b16 %v447, %v446
        %v484 = vpack.c.b16 %v449, %v448
        %v485 = vpack.c.b16 %v451, %v450
        %v486 = vpack.c.b16 %v453, %v452
        %v487 = vpack.c.b16 %v455, %v454
        %520 = vmatpush.bf16.msra.mxu0 %v463
        %521 = vmatpush.bf16.msra.mxu0 %v462
        %522 = vmatpush.bf16.msra.mxu0 %v461
        %523 = vmatpush.bf16.msra.mxu0 %v460
        %524 = vmatpush.bf16.msra.mxu0 %v459
        %525 = vmatpush.bf16.msra.mxu0 %v458
        %526 = vmatpush.bf16.msra.mxu0 %v457
        %527 = vmatpush.bf16.msra.mxu0 %v456
        %528 = vmatmul.bf16.gmra.mxu0 %v320
        %v529 = vpop.f32.mrf.mxu0
        %v530 = vadd.f32 0.0, %v529
        %v531 = vpop.f32.mrf.mxu0
        %532 = vdwg.mxu0
        %533 = vmatpush.bf16.msra.mxu0 %v471
        %534 = vmatpush.bf16.msra.mxu0 %v470
        %535 = vmatpush.bf16.msra.mxu0 %v469
        %536 = vmatpush.bf16.msra.mxu0 %v468
        %537 = vmatpush.bf16.msra.mxu0 %v467
        %538 = vmatpush.bf16.msra.mxu0 %v466
        %539 = vmatpush.bf16.msra.mxu0 %v465
        %540 = vmatpush.bf16.msra.mxu0 %v464
        %541 = vmatmul.bf16.gmra.mxu0 %v321
        %v542 = vpop.f32.mrf.mxu0
        %v543 = vadd.f32 %v530, %v542
        %v544 = vpop.f32.mrf.mxu0
        %545 = vdwg.mxu0
        %546 = vmatpush.bf16.msra.mxu0 %v479
        %547 = vmatpush.bf16.msra.mxu0 %v478
        %548 = vmatpush.bf16.msra.mxu0 %v477
        %549 = vmatpush.bf16.msra.mxu0 %v476
        %550 = vmatpush.bf16.msra.mxu0 %v475
        %551 = vmatpush.bf16.msra.mxu0 %v474
        %552 = vmatpush.bf16.msra.mxu0 %v473
        %553 = vmatpush.bf16.msra.mxu0 %v472
        %554 = vmatmul.bf16.gmra.mxu0 %v322
        %v555 = vpop.f32.mrf.mxu0
        %v556 = vadd.f32 %v543, %v555
        %v557 = vpop.f32.mrf.mxu0
        %558 = vdwg.mxu0
        %559 = vmatpush.bf16.msra.mxu0 %v487
        %560 = vmatpush.bf16.msra.mxu0 %v486
        %561 = vmatpush.bf16.msra.mxu0 %v485
        %562 = vmatpush.bf16.msra.mxu0 %v484
        %563 = vmatpush.bf16.msra.mxu0 %v483
        %564 = vmatpush.bf16.msra.mxu0 %v482
        %565 = vmatpush.bf16.msra.mxu0 %v481
        %566 = vmatpush.bf16.msra.mxu0 %v480
        %567 = vmatmul.bf16.gmra.mxu0 %v323
        %v568 = vpop.f32.mrf.mxu0
        %v569 = vadd.f32 %v556, %v568
        %v570 = vpop.f32.mrf.mxu0
        %571 = vdwg.mxu0
        %v572 = vadd.f32 %v247, %v569
        %573 = vst [vmem:[#allocation2] sm:$0xff] %v572
        %p574 = scmp.eq.s32.totalorder %s26, 1
        // Predicated region
        $region45: #{tpu_custom_call.1} parent=31 // pred_check
          %p575 = pneg %p574
        $region46: #{tpu_custom_call.1} parent=31 // pred_check_branch
          %577 = sbr.rel (%p575) target = $region48
        $region47: #{tpu_custom_call.1} parent=31 // pred_region
          %v578 = vld [vmem:[#allocation2] sm:$0xff]
          %v579 = vld [vmem:[%s2] sm:$0x1]
          %v581 = vperm.slane %v579, 0
          %v583 = vadd.f32 %v578, %v581
          %584 = vmax.xlane.f32.xlu0 %v583
          %v585 = vpop.xlane.xlu0 %584
          %v586 = vsub.f32 %v583, %v585
          %v587 = vmul.f32 %v586, 1.442695
          %v588 = vpow.pop %v587
          %589 = vadd.xlane.f32.xlu0 %v588
          %v590 = vpop.xlane.xlu0 %589
          %v591 = vrcp.pop %v590
          %v592 = vmul.f32 %v588, %v591
          %593 = vst [vmem:[#allocation8] sm:$0xff] %v592
        $region48: #{tpu_custom_call.1} parent=31 // pred_fallthru
          _
        // Predicated region
        $region49: #{tpu_custom_call.1} parent=31 // pred_check
          %p594 = pneg %p126
        $region50: #{tpu_custom_call.1} parent=31 // pred_check_branch
          %596 = sbr.rel (%p594) target = $region52
        $region51: #{tpu_custom_call.1} parent=31 // pred_region
          %598 = vsyncadd [#allocation5], 0
          %s599 = smul.addr %s25, 8
          %s600 = scalar_lea.hbm %s3, %s599
          %s602 = sshll.u32 [#allocation8], 4
          %s603 = int_to_ptr.vmem [resolvable:$true] %s602
          %s604 = sshll.u32 %s600, 4
          %s605 = int_to_ptr.hbm [resolvable:$true] %s604
          %607 = dma.vmem_to_hbm [thread:$0]  %s603, 128, %s605, [#allocation5]
        $region52: #{tpu_custom_call.1} parent=31 // pred_fallthru
          _
        // Predicated region
        $region53: #{tpu_custom_call.1} parent=31 // pred_check
          %p608 = pneg %p126
        $region54: #{tpu_custom_call.1} parent=31 // pred_check_branch
          %610 = sbr.rel (%p608) target = $region56
        $region55: #{tpu_custom_call.1} parent=31 // pred_region
          %612 = dma.done [#allocation5], 128
        $region56: #{tpu_custom_call.1} parent=31 // pred_fallthru
          _
      $region32: #{tpu_custom_call.1} parent=5 // pred_fallthru
        _
      %p613 = scmp.le.s32.totalorder 2, %s16
      // Predicated region
      $region57: #{tpu_custom_call.1} parent=5 // pred_check
        %p614 = pneg %p613
      $region58: #{tpu_custom_call.1} parent=5 // pred_check_branch
        %616 = sbr.rel (%p614) target = $region60
      $region59: #{tpu_custom_call.1} parent=5 // pred_region
        %s617 = ssub.s32 %s16, 2
      $region60: #{tpu_custom_call.1} parent=5 // pred_fallthru
        _
    $region6: #{tpu_custom_call.1} parent=1 // loop_footer
      %s20 = sadd.s32 1, %s16
    $region7: #{tpu_custom_call.1} parent=1 // loop_footer_branch
      %15 = sbr.rel target = $region3
    $region8: #{tpu_custom_call.1} parent=1 // loop_exit
      _
    %618 = vsyncpa [#allocation4], 1
    %s619 = scalar_lea.sflag [#allocation4], 1
    %620 = vsyncpa %s619, 1
    %621 = vsyncpa [#allocation7], 1
    %s622 = scalar_lea.sflag [#allocation7], 1
    %623 = vsyncpa %s622, 1
    %624 = vsyncpa [#allocation5], 1
    %s625 = scalar_lea.sflag [#allocation5], 1
    %626 = vsyncpa %s625, 1

</llo_original>
